<compile_context>
chip_gen: v6e
topology: v6e:2x2x1
jax: 0.10.0
libtpu: 0.0.40
codegen_flags: <defaults>
</compile_context>

<pallas_src>
import functools

import jax
import jax.numpy as jnp
from jax.experimental import pallas as pl
from jax.experimental.pallas import tpu as pltpu


def _attention_kernel(x_ref, wh_t_ref, bh_ref, wo_t_ref, bo_ref, o_ref, *,
                      T, T_valid, mxu_dtype):
    # x_ref:    (Bb*T, D_in)  flattened batch*time block
    # wh_t_ref: (D_in, H)     hidden.weight^T   (pre-transposed, mxu_dtype)
    # bh_ref:   (1, H)        hidden.bias       (f32)
    # wo_t_ref: (H, D_in)     out.weight^T      (pre-transposed, mxu_dtype)
    # bo_ref:   (1, D_in)     out.bias          (f32)
    # o_ref:    (Bb, D_in)    pooled output     (f32)
    x_in = x_ref[...]
    BT, D = x_in.shape
    Bb = BT // T

    # --- two linear layers as single MXU passes (bf16 operands, f32 acc) ---
    x_mx = x_in.astype(mxu_dtype)
    h = jnp.tanh(
        jnp.dot(x_mx, wh_t_ref[...], preferred_element_type=jnp.float32)
        + bh_ref[...])                                     # (Bb*T, H) f32
    s = (jnp.dot(h.astype(mxu_dtype), wo_t_ref[...],
                 preferred_element_type=jnp.float32)
         + bo_ref[...])                                    # (Bb*T, D) f32

    # --- softmax over T + weighted sum over T, all in f32 ---
    s3 = s.reshape(Bb, T, D)                               # free: T % 8 == 0
    if T_valid != T:                                       # mask padded steps
        t_idx = jax.lax.broadcasted_iota(jnp.int32, (Bb, T, D), 1)
        s3 = jnp.where(t_idx < T_valid, s3, -1e30)
    x3 = x_in.astype(jnp.float32).reshape(Bb, T, D)

    m = jnp.max(s3, axis=1, keepdims=True)                 # (Bb, 1, D)
    e = jnp.exp(s3 - m)                                    # (Bb, T, D)
    num = jnp.sum(e * x3, axis=1)                          # (Bb, D)
    den = jnp.sum(e, axis=1)                               # (Bb, D)

    # Division after the reduction: only Bb*D elements (negligible cost) and
    # exact, so alpha sums to exactly 1 (review correctness concern).
    o_ref[...] = (num / den).astype(o_ref.dtype)
    # TODO(synk): for very narrow D_in a lane-dense transposed (D_in, block_b)
    # store would avoid masked vst; skipped here (output is ~1/8 of traffic).


def _pick_block_b(B, cap=1024):
    """Largest layout-friendly batch block <= cap (review: sweep 512-2048)."""
    cap = max(1, cap)
    if B <= cap:
        block = B
    else:
        block = 0
        d = cap - (cap % 8)
        while d >= 8:              # largest divisor of B that is a mult. of 8
            if B % d == 0:
                block = d
                break
            d -= 8
        if block == 0:
            block = min(cap, 512)  # no clean divisor: batch gets zero-padded
    # Prefer >= 2 grid steps so dimension_semantics=("parallel",) can shard
    # across v7x's two TensorCores (no effect on v5e/v6e, 1 TC).
    if block == B and B >= 256 and (B // 2) % 8 == 0:
        block = B // 2
    return block


def attention_forward(x, w_hidden, b_hidden, w_out, b_out, *,
                      block_b=None, mxu_dtype=jnp.bfloat16):
    """x: (B, T, D_in); w_hidden: (H, D_in); w_out: (D_in, H)."""
    B, T, D_in = x.shape
    H = w_hidden.shape[0]

    # Pad T to a multiple of 8 so the in-kernel reshapes are pure metadata
    # changes (no VMEM relayout). Padded steps are masked before the softmax.
    T_pad = ((T + 7) // 8) * 8

    if block_b is None:
        block_b = _pick_block_b(B)
    B_pad = ((B + block_b - 1) // block_b) * block_b
    grid_b = B_pad // block_b

    if (B_pad, T_pad) != (B, T):
        x = jnp.pad(x, ((0, B_pad - B), (0, T_pad - T), (0, 0)))
    # Flatten batch*time host-side (free reshape of a contiguous array).
    x_flat = x.reshape(B_pad * T_pad, D_in)

    # Pre-transpose + pre-cast weights once; biases stay f32.
    wh_t = w_hidden.T.astype(mxu_dtype)               # (D_in, H)
    wo_t = w_out.T.astype(mxu_dtype)                  # (H, D_in)
    bh2 = b_hidden.reshape(1, H).astype(jnp.float32)
    bo2 = b_out.reshape(1, D_in).astype(jnp.float32)

    # Explicit VMEM budget: double-buffered in/out blocks + f32 intermediates.
    # Keeps large block_b safe under v7x's 64 MiB VMEM (32 MiB default scoped).
    x_item = jnp.dtype(x_flat.dtype).itemsize
    w_item = jnp.dtype(mxu_dtype).itemsize
    blk_x = block_b * T_pad * D_in * x_item
    blk_out = block_b * D_in * 4
    blk_w = (wh_t.size + wo_t.size) * w_item + (bh2.size + bo2.size) * 4
    interm = 4 * block_b * T_pad * max(D_in, H) * 4
    vmem_est = 2 * (blk_x + blk_out + blk_w) + interm
    vmem_limit = int(min(max(4 * vmem_est, 32 << 20), 48 << 20))

    cost = pl.CostEstimate(
        flops=4 * B_pad * T_pad * D_in * H,                   # two matmuls
        transcendentals=B_pad * T_pad * (H + D_in),           # tanh + exp
        bytes_accessed=(x_flat.size * x_item
                        + (wh_t.size + wo_t.size) * w_item
                        + (bh2.size + bo2.size + B_pad * D_in) * 4),
    )

    kernel = functools.partial(
        _attention_kernel, T=T_pad, T_valid=T, mxu_dtype=mxu_dtype)

    out = pl.pallas_call(
        kernel,
        out_shape=jax.ShapeDtypeStruct((B_pad, D_in), jnp.float32),
        grid_spec=pltpu.PrefetchScalarGridSpec(
            num_scalar_prefetch=0,
            grid=(grid_b,),
            in_specs=[
                pl.BlockSpec((block_b * T_pad, D_in), lambda b: (b, 0)),
                # Grid-invariant weights/biases: constant index_map => DMA'd
                # once. Buffered(1) residency skipped (only a few KiB here).
                pl.BlockSpec((D_in, H), lambda b: (0, 0)),
                pl.BlockSpec((1, H), lambda b: (0, 0)),
                pl.BlockSpec((H, D_in), lambda b: (0, 0)),
                pl.BlockSpec((1, D_in), lambda b: (0, 0)),
            ],
            out_specs=pl.BlockSpec((block_b, D_in), lambda b: (b, 0)),
        ),
        compiler_params=pltpu.CompilerParams(
            dimension_semantics=("parallel",),
            vmem_limit_bytes=vmem_limit,
        ),
        cost_estimate=cost,
    )(x_flat, wh_t, bh2, wo_t, bo2)
    return out[:B] if B_pad != B else out


def reference_forward(x, w_hidden, b_hidden, w_out, b_out):
    """Pure f32 module semantics."""
    h = jnp.tanh(jnp.einsum("btd,hd->bth", x, w_hidden) + b_hidden)
    s = jnp.einsum("bth,dh->btd", h, w_out) + b_out
    alpha = jax.nn.softmax(s, axis=1)
    return jnp.sum(alpha * x, axis=1)


def reference_forward_mx(x, w_hidden, b_hidden, w_out, b_out,
                         mxu_dtype=jnp.bfloat16):
    """Reference with the kernel's MXU precision (bf16 operands, f32 acc)."""
    f32 = jnp.float32
    h = jnp.tanh(
        jnp.einsum("btd,hd->bth", x.astype(mxu_dtype),
                   w_hidden.astype(mxu_dtype), preferred_element_type=f32)
        + b_hidden.astype(f32))
    s = jnp.einsum("bth,dh->btd", h.astype(mxu_dtype),
                   w_out.astype(mxu_dtype), preferred_element_type=f32) \
        + b_out.astype(f32)
    alpha = jax.nn.softmax(s, axis=1)
    return jnp.sum(alpha * x.astype(f32), axis=1)


def orthogonal_init(key, rows, cols):
    a = jax.random.normal(key, (max(rows, cols), min(rows, cols)), jnp.float32)
    q, r = jnp.linalg.qr(a)
    q = q * jnp.sign(jnp.diagonal(r))[None, :]
    if rows < cols:
        q = q.T
    return q[:rows, :cols]


if __name__ == "__main__":
    B, T, D_in, H = 2, 8, 32, 32

    key = jax.random.PRNGKey(0)
    kx, kw1, kb1, kw2, kb2 = jax.random.split(key, 5)

    x = jax.random.normal(kx, (B, T, D_in), jnp.float32)

    # hidden.weight: orthogonal init (as in the module); hidden.bias: small uniform
    w_hidden = orthogonal_init(kw1, H, D_in)
    b_hidden = jax.random.uniform(kb1, (H,), jnp.float32, -0.1, 0.1)
    # out.weight / out.bias: module leaves default init; use deterministic uniform
    w_out = jax.random.uniform(kw2, (D_in, H), jnp.float32, -0.1, 0.1)
    b_out = jax.random.uniform(kb2, (D_in,), jnp.float32, -0.1, 0.1)

    y = attention_forward(x, w_hidden, b_hidden, w_out, b_out)
    y = jax.block_until_ready(y)
    assert y.shape == (B, D_in)

    # Tight check against a reference using the same MXU precision (bf16
    # operands, f32 accumulation, f32 softmax/pooling).
    y_mx = reference_forward_mx(x, w_hidden, b_hidden, w_out, b_out)
    assert jnp.allclose(y, y_mx, atol=1e-3, rtol=1e-3), \
        "mismatch vs same-precision reference"

    # Loose check against the pure-f32 module semantics (bf16 MXU budget).
    y_f32 = reference_forward(x, w_hidden, b_hidden, w_out, b_out)
    assert jnp.allclose(y, y_f32, atol=5e-2, rtol=5e-2), \
        "mismatch vs f32 reference"

    print("KERNEL_OK")
</pallas_src>

<mosaic_0001>
module attributes {stable_mosaic.version = 11 : i64} {
  func.func @_attention_kernel(%arg0: i32, %arg1: memref<16x32xf32, #tpu.memory_space<vmem>>, %arg2: memref<32x32xbf16, #tpu.memory_space<vmem>>, %arg3: memref<1x32xf32, #tpu.memory_space<vmem>>, %arg4: memref<32x32xbf16, #tpu.memory_space<vmem>>, %arg5: memref<1x32xf32, #tpu.memory_space<vmem>>, %arg6: memref<2x32xf32, #tpu.memory_space<vmem>>) attributes {dimension_semantics = [#tpu.dimension_semantics<parallel>], iteration_bounds = array<i64: 1>, scalar_prefetch = 0 : i64, scratch_operands = 0 : i64, tpu.core_type = #tpu.core_type<tc>, window_params = [{transform_indices = @transform_0, window_bounds = array<i64: 16, 32>}, {pipeline_mode = #tpu.pipeline_mode<synchronous>, transform_indices = @transform_1, window_bounds = array<i64: 32, 32>}, {pipeline_mode = #tpu.pipeline_mode<synchronous>, transform_indices = @transform_2, window_bounds = array<i64: 1, 32>}, {pipeline_mode = #tpu.pipeline_mode<synchronous>, transform_indices = @transform_3, window_bounds = array<i64: 32, 32>}, {pipeline_mode = #tpu.pipeline_mode<synchronous>, transform_indices = @transform_4, window_bounds = array<i64: 1, 32>}, {transform_indices = @transform_5, window_bounds = array<i64: 2, 32>}]} {
    %c0 = arith.constant 0 : index
    %c0_0 = arith.constant 0 : index
    %0 = vector.load %arg1[%c0, %c0_0] : memref<16x32xf32, #tpu.memory_space<vmem>>, vector<16x32xf32>
    %1 = arith.truncf %0 : vector<16x32xf32> to vector<16x32xbf16>
    %c0_1 = arith.constant 0 : index
    %c0_2 = arith.constant 0 : index
    %2 = vector.load %arg2[%c0_1, %c0_2] : memref<32x32xbf16, #tpu.memory_space<vmem>>, vector<32x32xbf16>
    %cst = arith.constant dense<0.000000e+00> : vector<16x32xf32>
    %3 = tpu.matmul %1, %2, %cst {dimension_numbers = #tpu.dot_dimension_numbers<[1], [0], [0], [1], [0, 0, 1, 1], [], []>} : vector<16x32xbf16>, vector<32x32xbf16>, vector<16x32xf32> -> vector<16x32xf32>
    %c0_3 = arith.constant 0 : index
    %c0_4 = arith.constant 0 : index
    %4 = vector.load %arg3[%c0_3, %c0_4] : memref<1x32xf32, #tpu.memory_space<vmem>>, vector<1x32xf32>
    %5 = vector.broadcast %4 : vector<1x32xf32> to vector<16x32xf32>
    %6 = arith.addf %3, %5 : vector<16x32xf32>
    %7 = math.tanh %6 : vector<16x32xf32>
    %8 = arith.truncf %7 : vector<16x32xf32> to vector<16x32xbf16>
    %c0_5 = arith.constant 0 : index
    %c0_6 = arith.constant 0 : index
    %9 = vector.load %arg4[%c0_5, %c0_6] : memref<32x32xbf16, #tpu.memory_space<vmem>>, vector<32x32xbf16>
    %cst_7 = arith.constant dense<0.000000e+00> : vector<16x32xf32>
    %10 = tpu.matmul %8, %9, %cst_7 {dimension_numbers = #tpu.dot_dimension_numbers<[1], [0], [0], [1], [0, 0, 1, 1], [], []>} : vector<16x32xbf16>, vector<32x32xbf16>, vector<16x32xf32> -> vector<16x32xf32>
    %c0_8 = arith.constant 0 : index
    %c0_9 = arith.constant 0 : index
    %11 = vector.load %arg5[%c0_8, %c0_9] : memref<1x32xf32, #tpu.memory_space<vmem>>, vector<1x32xf32>
    %12 = vector.broadcast %11 : vector<1x32xf32> to vector<16x32xf32>
    %13 = arith.addf %10, %12 : vector<16x32xf32>
    %14 = vector.shape_cast %13 : vector<16x32xf32> to vector<2x8x32xf32>
    %15 = vector.shape_cast %0 : vector<16x32xf32> to vector<2x8x32xf32>
    %cst_10 = arith.constant dense<0xFF800000> : vector<2x32xf32>
    %16 = vector.multi_reduction <maximumf>, %14, %cst_10 [1] : vector<2x8x32xf32> to vector<2x32xf32>
    %17 = vector.shape_cast %16 : vector<2x32xf32> to vector<2x1x32xf32>
    %18 = vector.broadcast %17 : vector<2x1x32xf32> to vector<2x8x32xf32>
    %19 = arith.subf %14, %18 : vector<2x8x32xf32>
    %20 = math.exp %19 : vector<2x8x32xf32>
    %21 = arith.mulf %20, %15 : vector<2x8x32xf32>
    %cst_11 = arith.constant dense<0.000000e+00> : vector<2x32xf32>
    %22 = vector.multi_reduction <add>, %21, %cst_11 [1] : vector<2x8x32xf32> to vector<2x32xf32>
    %cst_12 = arith.constant dense<0.000000e+00> : vector<2x32xf32>
    %23 = vector.multi_reduction <add>, %20, %cst_12 [1] : vector<2x8x32xf32> to vector<2x32xf32>
    %24 = arith.divf %22, %23 : vector<2x32xf32>
    %c0_13 = arith.constant 0 : index
    %c0_14 = arith.constant 0 : index
    %25 = vector.load %arg6[%c0_13, %c0_14] : memref<2x32xf32, #tpu.memory_space<vmem>>, vector<2x32xf32>
    tpu.vector_store %arg6[%c0_13, %c0_14], %24 {strides = array<i32>} : memref<2x32xf32, #tpu.memory_space<vmem>>, vector<2x32xf32>,
    return
  }
  func.func @transform_0(%arg0: i32) -> (i32, i32) {
    %c0_i32 = arith.constant 0 : i32
    %c0_i32_0 = arith.constant 0 : i32
    return %arg0, %c0_i32 : i32, i32
  }
  func.func @transform_1(%arg0: i32) -> (i32, i32) {
    %c0_i32 = arith.constant 0 : i32
    %c0_i32_0 = arith.constant 0 : i32
    %c0_i32_1 = arith.constant 0 : i32
    return %c0_i32, %c0_i32_0 : i32, i32
  }
  func.func @transform_2(%arg0: i32) -> (i32, i32) {
    %c0_i32 = arith.constant 0 : i32
    %c0_i32_0 = arith.constant 0 : i32
    %c0_i32_1 = arith.constant 0 : i32
    return %c0_i32, %c0_i32_0 : i32, i32
  }
  func.func @transform_3(%arg0: i32) -> (i32, i32) {
    %c0_i32 = arith.constant 0 : i32
    %c0_i32_0 = arith.constant 0 : i32
    %c0_i32_1 = arith.constant 0 : i32
    return %c0_i32, %c0_i32_0 : i32, i32
  }
  func.func @transform_4(%arg0: i32) -> (i32, i32) {
    %c0_i32 = arith.constant 0 : i32
    %c0_i32_0 = arith.constant 0 : i32
    %c0_i32_1 = arith.constant 0 : i32
    return %c0_i32, %c0_i32_0 : i32, i32
  }
  func.func @transform_5(%arg0: i32) -> (i32, i32) {
    %c0_i32 = arith.constant 0 : i32
    %c0_i32_0 = arith.constant 0 : i32
    return %arg0, %c0_i32 : i32, i32
  }
}

</mosaic_0001>

<llo_original>
// kernel: tpu_custom_call.1
$region0: #{tpu_custom_call.1}
  #allocation0 [shape = 'u32[]', space=smem, size = 0x4, offset = 0x4, fixed_abs, tag = 'smem constant byte address 0x4 - core index']
  #allocation1 [shape = 'u32[144,128]{1,0:T(1,128)}', space=vmem, size = 0x12000, scoped, tag = 'internal scratch']
  %s0 = inlined_call_operand.hbm [shape: f32[16,32], index: 0, kind: input, shape index: {}]
  %s1 = inlined_call_operand.hbm [shape: bf16[32,32], index: 1, kind: input, shape index: {}]
  %s2 = inlined_call_operand.vmem [shape: f32[1,32], index: 2, kind: input, shape index: {}]
  %s3 = inlined_call_operand.hbm [shape: bf16[32,32], index: 3, kind: input, shape index: {}]
  %s4 = inlined_call_operand.vmem [shape: f32[1,32], index: 4, kind: input, shape index: {}]
  %s5 = inlined_call_operand.hbm [shape: f32[2,32], index: 5, kind: output, shape index: {}]
  %s6 = sld [smem:[#allocation0]]
  $region42: #{tpu_custom_call.1} parent=0
    _
  %s8 = ssub.s32 1, %s6
  %s9 = scalar_select 0, %s8, %s6
  $region1: #{tpu_custom_call.1} parent=0
    #allocation2 [shape = 'u8[8192]{0}', space=vmem, size = 0x2000, scoped, tag = 'input window, operand 0, single buffered']
    #allocation3 [shape = 's32[1]{0}', space=sflag, size = 0x4, scoped, tag = 'scoped memory for tpu_custom_call.1']
    #allocation4 [shape = 's32[1]{0}', space=sflag, size = 0x4, scoped, tag = 'scoped memory for tpu_custom_call.1']
    #allocation5 [shape = 'u8[8192]{0}', space=vmem, size = 0x2000, scoped, tag = 'input window, operand 1, single buffered']
    #allocation6 [shape = 's32[1]{0}', space=sflag, size = 0x4, scoped, tag = 'scoped memory for tpu_custom_call.1']
    #allocation7 [shape = 'u8[8192]{0}', space=vmem, size = 0x2000, scoped, tag = 'input window, operand 3, single buffered']
    #allocation8 [shape = 'u8[1024]{0}', space=vmem, size = 0x400, scoped, tag = 'output window, operand 0, single buffered']
    %10 = vsyncpa [#allocation3], 0
    %11 = vsyncpa [#allocation6], 0
    %12 = vsyncpa [#allocation4], 0
    // Predicated region
    $region2: #{tpu_custom_call.1} parent=1 // pred_check
      _
    $region3: #{tpu_custom_call.1} parent=1 // pred_check_branch
      %14 = sbr.rel (0) target = $region5
    $region4: #{tpu_custom_call.1} parent=1 // pred_region
      %s16 = ssub.s32 256, 256
      %17 = vsyncadd [#allocation3], %s16
      %s18 = sshll.u32 [#allocation2], 4
      %s19 = int_to_ptr.vmem [resolvable:$true] %s18
      %24 = dma.hbm_to_vmem [thread:$0]  %s0, 256, %s19, [#allocation3], 128, 128, 8
    $region5: #{tpu_custom_call.1} parent=1 // pred_fallthru
      _
    // Predicated region
    $region6: #{tpu_custom_call.1} parent=1 // pred_check
      _
    $region7: #{tpu_custom_call.1} parent=1 // pred_check_branch
      %26 = sbr.rel (0) target = $region9
    $region8: #{tpu_custom_call.1} parent=1 // pred_region
      %s28 = ssub.s32 256, 256
      %29 = vsyncadd [#allocation6], %s28
      %s30 = sshll.u32 [#allocation5], 4
      %s31 = int_to_ptr.vmem [resolvable:$true] %s30
      %36 = dma.hbm_to_vmem [thread:$0]  %s1, 256, %s31, [#allocation6], 64, 64, 4
    $region9: #{tpu_custom_call.1} parent=1 // pred_fallthru
      _
    // Predicated region
    $region10: #{tpu_custom_call.1} parent=1 // pred_check
      _
    $region11: #{tpu_custom_call.1} parent=1 // pred_check_branch
      %38 = sbr.rel (0) target = $region13
    $region12: #{tpu_custom_call.1} parent=1 // pred_region
      _
    $region13: #{tpu_custom_call.1} parent=1 // pred_fallthru
      _
    // Predicated region
    $region14: #{tpu_custom_call.1} parent=1 // pred_check
      _
    $region15: #{tpu_custom_call.1} parent=1 // pred_check_branch
      %40 = sbr.rel (0) target = $region17
    $region16: #{tpu_custom_call.1} parent=1 // pred_region
      %s42 = ssub.s32 256, 256
      %43 = vsyncadd [#allocation6], %s42
      %s44 = sshll.u32 [#allocation7], 4
      %s45 = int_to_ptr.vmem [resolvable:$true] %s44
      %50 = dma.hbm_to_vmem [thread:$0]  %s3, 256, %s45, [#allocation6], 64, 64, 4
    $region17: #{tpu_custom_call.1} parent=1 // pred_fallthru
      _
    // Predicated region
    $region18: #{tpu_custom_call.1} parent=1 // pred_check
      _
    $region19: #{tpu_custom_call.1} parent=1 // pred_check_branch
      %52 = sbr.rel (0) target = $region21
    $region20: #{tpu_custom_call.1} parent=1 // pred_region
      _
    $region21: #{tpu_custom_call.1} parent=1 // pred_fallthru
      _
    // Predicated region
    $region22: #{tpu_custom_call.1} parent=1 // pred_check
      _
    $region23: #{tpu_custom_call.1} parent=1 // pred_check_branch
      %54 = sbr.rel (0) target = $region25
    $region24: #{tpu_custom_call.1} parent=1 // pred_region
      %55 = dma.done [#allocation3], 256
    $region25: #{tpu_custom_call.1} parent=1 // pred_fallthru
      _
    // Predicated region
    $region26: #{tpu_custom_call.1} parent=1 // pred_check
      _
    $region27: #{tpu_custom_call.1} parent=1 // pred_check_branch
      %57 = sbr.rel (0) target = $region29
    $region28: #{tpu_custom_call.1} parent=1 // pred_region
      %58 = dma.done [#allocation6], 256
    $region29: #{tpu_custom_call.1} parent=1 // pred_fallthru
      _
    // Predicated region
    $region30: #{tpu_custom_call.1} parent=1 // pred_check
      _
    $region31: #{tpu_custom_call.1} parent=1 // pred_check_branch
      %60 = sbr.rel (0) target = $region33
    $region32: #{tpu_custom_call.1} parent=1 // pred_region
      %61 = dma.done [#allocation6], 256
    $region33: #{tpu_custom_call.1} parent=1 // pred_fallthru
      _
    %v63 = vld [vmem:[#allocation2] sm:$0xff]
    %v64 = vld [vmem:[#allocation2 + $0x8] sm:$0xff]
    %v65 = vpack.c.bf16 %v64, %v63
    %v66 = vld [vmem:[#allocation5] sm:$0xf]
    %v67 = vld [vmem:[#allocation5 + $0x4] sm:$0xf]
    %v68 = vld [vmem:[#allocation5 + $0x8] sm:$0xf]
    %v69 = vld [vmem:[#allocation5 + $0xc] sm:$0xf]
    %v70 = vld [vmem:[%s2] sm:$0x1]
    %v72 = vlaneseq
    %v73 = vshrl.u32 %v72, 7
    %v74 = vsub.s32 0, %v73
    %v75 = vrot.slane %v70, %v74
    %v81 = vunpack.c.l.b16 %v66
    %v82 = vunpack.c.l.b16 %v67
    %v83 = vunpack.c.l.b16 %v68
    %v84 = vunpack.c.l.b16 %v69
    %v85 = vpack.c.b16 %v82, %v81
    %v86 = vpack.c.b16 %v84, %v83
    %vm89 = vcmask 261120
    %v91 = vsel %vm89, %v65, 0
    %93 = vmatprep.subr.bf16.mxu0 0
    %94 = vmatpush1.bf16.msra.mxu0 0
    %95 = vmatprep.subr.bf16.mxu0 0
    %96 = vmatpush1.bf16.msra.mxu0 0
    %97 = vmatprep.subr.bf16.mxu0 0
    %98 = vmatpush1.bf16.msra.mxu0 0
    %99 = vmatprep.subr.bf16.mxu0 0
    %100 = vmatpush1.bf16.msra.mxu0 0
    %101 = vmatprep.subr.bf16.mxu0 0
    %102 = vmatpush1.bf16.msra.mxu0 0
    %103 = vmatprep.subr.bf16.mxu0 0
    %104 = vmatpush1.bf16.msra.mxu0 0
    %105 = vmatprep.subr.bf16.mxu0 0
    %106 = vmatpush1.bf16.msra.mxu0 %v86
    %107 = vmatprep.subr.bf16.mxu0 0
    %108 = vmatpush1.bf16.msra.mxu0 %v85
    %109 = vmatprep.subr.bf16.mxu0 0
    %110 = vmatpush2.bf16.msra.mxu0 0
    %111 = vmatprep.subr.bf16.mxu0 0
    %112 = vmatpush2.bf16.msra.mxu0 0
    %113 = vmatprep.subr.bf16.mxu0 0
    %114 = vmatpush2.bf16.msra.mxu0 0
    %115 = vmatprep.subr.bf16.mxu0 0
    %116 = vmatpush2.bf16.msra.mxu0 0
    %117 = vmatprep.subr.bf16.mxu0 0
    %118 = vmatpush2.bf16.msra.mxu0 0
    %119 = vmatprep.subr.bf16.mxu0 0
    %120 = vmatpush2.bf16.msra.mxu0 0
    %121 = vmatprep.subr.bf16.mxu0 0
    %122 = vmatpush2.bf16.msra.mxu0 0
    %123 = vmatprep.subr.bf16.mxu0 0
    %124 = vmatpush2.bf16.msra.mxu0 0
    %125 = vmatprep.mubr.bf16.mxu0 0
    %126 = vmatmul.mubr.bf16.gmra.mxu0 %v91
    %v127 = vpop.f32.mrf.mxu0
    %v128 = vadd.f32 %v75, %v127
    %v129 = vpop.f32.mrf.mxu0
    %v130 = vpop.f32.mrf.mxu0
    %v131 = vadd.f32 %v75, %v130
    %v132 = vpop.f32.mrf.mxu0
    %133 = vdwg.mxu0
    %v134 = vtanh.pop %v128
    %v135 = vtanh.pop %v131
    %v136 = vpack.c.bf16 %v135, %v134
    %v137 = vld [vmem:[#allocation7] sm:$0xf]
    %v138 = vld [vmem:[#allocation7 + $0x4] sm:$0xf]
    %v139 = vld [vmem:[#allocation7 + $0x8] sm:$0xf]
    %v140 = vld [vmem:[#allocation7 + $0xc] sm:$0xf]
    %v141 = vld [vmem:[%s4] sm:$0x1]
    %v143 = vlaneseq
    %v144 = vshrl.u32 %v143, 7
    %v145 = vsub.s32 0, %v144
    %v146 = vrot.slane %v141, %v145
    %v152 = vunpack.c.l.b16 %v137
    %v153 = vunpack.c.l.b16 %v138
    %v154 = vunpack.c.l.b16 %v139
    %v155 = vunpack.c.l.b16 %v140
    %v156 = vpack.c.b16 %v153, %v152
    %v157 = vpack.c.b16 %v155, %v154
    %v161 = vsel %vm89, %v136, 0
    %163 = vmatprep.subr.bf16.mxu0 0
    %164 = vmatpush1.bf16.msra.mxu0 0
    %165 = vmatprep.subr.bf16.mxu0 0
    %166 = vmatpush1.bf16.msra.mxu0 0
    %167 = vmatprep.subr.bf16.mxu0 0
    %168 = vmatpush1.bf16.msra.mxu0 0
    %169 = vmatprep.subr.bf16.mxu0 0
    %170 = vmatpush1.bf16.msra.mxu0 0
    %171 = vmatprep.subr.bf16.mxu0 0
    %172 = vmatpush1.bf16.msra.mxu0 0
    %173 = vmatprep.subr.bf16.mxu0 0
    %174 = vmatpush1.bf16.msra.mxu0 0
    %175 = vmatprep.subr.bf16.mxu0 0
    %176 = vmatpush1.bf16.msra.mxu0 %v157
    %177 = vmatprep.subr.bf16.mxu0 0
    %178 = vmatpush1.bf16.msra.mxu0 %v156
    %179 = vmatprep.subr.bf16.mxu0 0
    %180 = vmatpush2.bf16.msra.mxu0 0
    %181 = vmatprep.subr.bf16.mxu0 0
    %182 = vmatpush2.bf16.msra.mxu0 0
    %183 = vmatprep.subr.bf16.mxu0 0
    %184 = vmatpush2.bf16.msra.mxu0 0
    %185 = vmatprep.subr.bf16.mxu0 0
    %186 = vmatpush2.bf16.msra.mxu0 0
    %187 = vmatprep.subr.bf16.mxu0 0
    %188 = vmatpush2.bf16.msra.mxu0 0
    %189 = vmatprep.subr.bf16.mxu0 0
    %190 = vmatpush2.bf16.msra.mxu0 0
    %191 = vmatprep.subr.bf16.mxu0 0
    %192 = vmatpush2.bf16.msra.mxu0 0
    %193 = vmatprep.subr.bf16.mxu0 0
    %194 = vmatpush2.bf16.msra.mxu0 0
    %195 = vmatprep.mubr.bf16.mxu0 0
    %196 = vmatmul.mubr.bf16.gmra.mxu0 %v161
    %v197 = vpop.f32.mrf.mxu0
    %v198 = vadd.f32 %v146, %v197
    %v199 = vpop.f32.mrf.mxu0
    %v200 = vpop.f32.mrf.mxu0
    %v201 = vadd.f32 %v146, %v200
    %v202 = vpop.f32.mrf.mxu0
    %203 = vdwg.mxu0
    %v204 = vsel %vm89, %v198, -inf
    %v205 = vrot.slane %v204, 4
    %v206 = vmax.f32 %v204, %v205
    %v207 = vrot.slane %v206, 2
    %v208 = vmax.f32 %v206, %v207
    %v209 = vrot.slane %v208, 1
    %v210 = vmax.f32 %v208, %v209
    %v211 = vsel %vm89, %v201, -inf
    %v212 = vrot.slane %v211, 4
    %v213 = vmax.f32 %v211, %v212
    %v214 = vrot.slane %v213, 2
    %v215 = vmax.f32 %v213, %v214
    %v216 = vrot.slane %v215, 1
    %v217 = vmax.f32 %v215, %v216
    %v218 = vsub.f32 %v198, %v210
    %v219 = vsub.f32 %v201, %v217
    %v220 = vmul.f32 %v218, 1.442695
    %v221 = vpow.pop %v220
    %v222 = vmul.f32 %v219, 1.442695
    %v223 = vpow.pop %v222
    %v224 = vmul.f32 %v221, %v63
    %v225 = vmul.f32 %v223, %v64
    %v226 = vsel %vm89, %v224, 0.0
    %v227 = vrot.slane %v226, 4
    %v228 = vadd.f32 %v226, %v227
    %v229 = vrot.slane %v228, 2
    %v230 = vadd.f32 %v228, %v229
    %v231 = vrot.slane %v230, 1
    %v232 = vadd.f32 %v230, %v231
    %v233 = vsel %vm89, %v225, 0.0
    %v234 = vrot.slane %v233, 4
    %v235 = vadd.f32 %v233, %v234
    %v236 = vrot.slane %v235, 2
    %v237 = vadd.f32 %v235, %v236
    %v238 = vrot.slane %v237, 1
    %v239 = vadd.f32 %v237, %v238
    %v240 = vsel %vm89, %v221, 0.0
    %v241 = vrot.slane %v240, 4
    %v242 = vadd.f32 %v240, %v241
    %v243 = vrot.slane %v242, 2
    %v244 = vadd.f32 %v242, %v243
    %v245 = vrot.slane %v244, 1
    %v246 = vadd.f32 %v244, %v245
    %v247 = vsel %vm89, %v223, 0.0
    %v248 = vrot.slane %v247, 4
    %v249 = vadd.f32 %v247, %v248
    %v250 = vrot.slane %v249, 2
    %v251 = vadd.f32 %v249, %v250
    %v252 = vrot.slane %v251, 1
    %v253 = vadd.f32 %v251, %v252
    %v254 = vrcp.pop %v246
    %v255 = vmul.f32 %v232, %v254
    %v256 = vrcp.pop %v253
    %v257 = vmul.f32 %v239, %v256
    %vm260 = vcmask 1041409
    %v261 = vsel %vm260, %v257, %v255
    %vm263 = vcmask 254976
    %264 = vst.msk [vmem:[#allocation8] sm:$0x3] %vm263, %v261
    // Predicated region
    $region34: #{tpu_custom_call.1} parent=1 // pred_check
      _
    $region35: #{tpu_custom_call.1} parent=1 // pred_check_branch
      %266 = sbr.rel (0) target = $region37
    $region36: #{tpu_custom_call.1} parent=1 // pred_region
      %s268 = ssub.s32 32, 32
      %269 = vsyncadd [#allocation4], %s268
      %s271 = sshll.u32 [#allocation8], 4
      %s272 = int_to_ptr.vmem [resolvable:$true] %s271
      %274 = dma.vmem_to_hbm [thread:$0]  %s272, 32, %s5, [#allocation4]
    $region37: #{tpu_custom_call.1} parent=1 // pred_fallthru
      _
    // Predicated region
    $region38: #{tpu_custom_call.1} parent=1 // pred_check
      _
    $region39: #{tpu_custom_call.1} parent=1 // pred_check_branch
      %276 = sbr.rel (0) target = $region41
    $region40: #{tpu_custom_call.1} parent=1 // pred_region
      %277 = dma.done [#allocation4], 32
    $region41: #{tpu_custom_call.1} parent=1 // pred_fallthru
      _
    %278 = vsyncpa [#allocation3], 1
    %279 = vsyncpa [#allocation6], 1
    %280 = vsyncpa [#allocation4], 1

</llo_original>
